<compile_context>
chip_gen: v7x
topology: tpu7x:2x2x1
jax: 0.10.0
libtpu: 0.0.40
codegen_flags: <defaults>
</compile_context>

<pallas_src>
import jax
import jax.numpy as jnp
from jax.experimental import pallas as pl
from jax.experimental.pallas import tpu as pltpu

BN_EPS = 1e-5
LANE = 128


def _round_up(n, m):
    return ((n + m - 1) // m) * m


def _pad_to(a, shape):
    pads = [(0, t - s) for s, t in zip(a.shape, shape)]
    if all(p == (0, 0) for p in pads):
        return a
    return jnp.pad(a, pads)


def _bn_train_scale_shift(h, gamma, beta):
    """Training-mode BatchNorm1d in scale/shift form (f32 elementwise).

    scale = gamma * rsqrt(var + eps), shift = beta - mu * scale, out = h*scale + shift.
    One-pass variance E[h^2] - mu^2 (clamped at 0 against fp cancellation).
    """
    mu = jnp.mean(h, axis=0, keepdims=True)
    var = jnp.maximum(jnp.mean(h * h, axis=0, keepdims=True) - mu * mu, 0.0)
    scale = gamma * jax.lax.rsqrt(var + BN_EPS)
    shift = beta - mu * scale
    return h * scale + shift


def encoder_kernel(
    x_ref,
    w1_ref, g1_ref, be1_ref,
    w2_ref, g2_ref, be2_ref,
    wh_ref, bh_ref,
    out_ref,
):
    # fc1 (bias folded away by BN mean subtraction) -> bn1 -> relu
    h = jnp.dot(x_ref[...], w1_ref[...], preferred_element_type=jnp.float32)
    h = jnp.maximum(_bn_train_scale_shift(h, g1_ref[...], be1_ref[...]), 0.0)

    # fc2 (bias folded away) -> bn2 -> relu
    h = jnp.dot(h.astype(w2_ref.dtype), w2_ref[...],
                preferred_element_type=jnp.float32)
    h = jnp.maximum(_bn_train_scale_shift(h, g2_ref[...], be2_ref[...]), 0.0)

    # fused heads: one matmul producing [mean | log_var] in one lane-dense store
    out_ref[...] = (
        jnp.dot(h.astype(wh_ref.dtype), wh_ref[...],
                preferred_element_type=jnp.float32)
        + bh_ref[...]
    )


def encoder_forward(x, params, *, matmul_dtype=jnp.float32):
    """Run the fused Encoder kernel.  `matmul_dtype=jnp.bfloat16` halves
    weight bytes and uses the native bf16 MXU path on v6e/v7x (accumulation
    and all BN/ReLU math stay f32)."""
    B, in_f = x.shape
    hid = params["w1"].shape[1]
    lat = params["wm"].shape[1]

    in_p = _round_up(in_f, LANE)
    hid_p = _round_up(hid, LANE)
    head_p = _round_up(2 * lat, LANE)

    # Lane-pad everything in the wrapper (plain XLA ops, outside the kernel).
    x_p = _pad_to(x, (B, in_p)).astype(matmul_dtype)
    w1_p = _pad_to(params["w1"], (in_p, hid_p)).astype(matmul_dtype)
    g1_p = _pad_to(params["g1"], (1, hid_p))
    be1_p = _pad_to(params["be1"], (1, hid_p))
    w2_p = _pad_to(params["w2"], (hid_p, hid_p)).astype(matmul_dtype)
    g2_p = _pad_to(params["g2"], (1, hid_p))
    be2_p = _pad_to(params["be2"], (1, hid_p))

    # Fused heads: [wm | wv] and [bm | bv].
    wh = jnp.concatenate([params["wm"], params["wv"]], axis=1)
    bh = jnp.concatenate([params["bm"], params["bv"]], axis=1)
    wh_p = _pad_to(wh, (hid_p, head_p)).astype(matmul_dtype)
    bh_p = _pad_to(bh, (1, head_p))

    vmem_spec = pl.BlockSpec(memory_space=pltpu.MemorySpace.VMEM)
    args = (x_p, w1_p, g1_p, be1_p, w2_p, g2_p, be2_p, wh_p, bh_p)

    out = pl.pallas_call(
        encoder_kernel,
        out_shape=jax.ShapeDtypeStruct((B, head_p), jnp.float32),
        in_specs=[vmem_spec] * len(args),
        out_specs=vmem_spec,
    )(*args)

    mean = out[:, :lat]
    log_var = out[:, lat:2 * lat]
    return mean, log_var


def init_params(key, input_size, hidden_size, latent_size):
    ks = jax.random.split(key, 8)

    def linear(kw, kb, fan_in, fan_out):
        bound = 1.0 / jnp.sqrt(fan_in)
        w = jax.random.uniform(kw, (fan_in, fan_out), jnp.float32, -bound, bound)
        b = jax.random.uniform(kb, (1, fan_out), jnp.float32, -bound, bound)
        return w, b

    w1, b1 = linear(ks[0], ks[1], input_size, hidden_size)
    w2, b2 = linear(ks[2], ks[3], hidden_size, hidden_size)
    wm, bm = linear(ks[4], ks[5], hidden_size, latent_size)
    wv, bv = linear(ks[6], ks[7], hidden_size, latent_size)

    ones = jnp.ones((1, hidden_size), jnp.float32)
    zeros = jnp.zeros((1, hidden_size), jnp.float32)
    return dict(
        w1=w1, b1=b1, g1=ones, be1=zeros,
        w2=w2, b2=b2, g2=ones, be2=zeros,
        wm=wm, bm=bm, wv=wv, bv=bv,
    )


def encoder_reference(x, p):
    # Plain-JAX reference matching the PyTorch module exactly (biases kept,
    # two-pass variance) — proves the in-kernel simplifications are exact.
    def bn(h, g, b):
        mu = jnp.mean(h, axis=0, keepdims=True)
        var = jnp.mean((h - mu) ** 2, axis=0, keepdims=True)
        return (h - mu) / jnp.sqrt(var + BN_EPS) * g + b

    h = jnp.maximum(bn(x @ p["w1"] + p["b1"], p["g1"], p["be1"]), 0.0)
    h = jnp.maximum(bn(h @ p["w2"] + p["b2"], p["g2"], p["be2"]), 0.0)
    return h @ p["wm"] + p["bm"], h @ p["wv"] + p["bv"]


if __name__ == "__main__":
    B, INPUT, HIDDEN, LATENT = 8, 16, 32, 8

    key = jax.random.PRNGKey(0)
    k_x, k_p = jax.random.split(key)
    x = jax.random.normal(k_x, (B, INPUT), jnp.float32)
    params = init_params(k_p, INPUT, HIDDEN, LATENT)

    mean, log_var = encoder_forward(x, params)  # f32 matmuls for exact check
    jax.block_until_ready((mean, log_var))

    ref_mean, ref_logvar = encoder_reference(x, params)
    assert mean.shape == (B, LATENT) and log_var.shape == (B, LATENT)
    assert jnp.allclose(mean, ref_mean, atol=1e-3, rtol=1e-3)
    assert jnp.allclose(log_var, ref_logvar, atol=1e-3, rtol=1e-3)

    print("KERNEL_OK")
</pallas_src>

<mosaic_0001>
module attributes {stable_mosaic.version = 11 : i64} {
  func.func @encoder_kernel(%arg0: memref<8x128xf32, #tpu.memory_space<vmem>>, %arg1: memref<128x128xf32, #tpu.memory_space<vmem>>, %arg2: memref<1x128xf32, #tpu.memory_space<vmem>>, %arg3: memref<1x128xf32, #tpu.memory_space<vmem>>, %arg4: memref<128x128xf32, #tpu.memory_space<vmem>>, %arg5: memref<1x128xf32, #tpu.memory_space<vmem>>, %arg6: memref<1x128xf32, #tpu.memory_space<vmem>>, %arg7: memref<128x128xf32, #tpu.memory_space<vmem>>, %arg8: memref<1x128xf32, #tpu.memory_space<vmem>>, %arg9: memref<8x128xf32, #tpu.memory_space<vmem>>) attributes {dimension_semantics = [], scalar_prefetch = 0 : i64, scratch_operands = 0 : i64, tpu.core_type = #tpu.core_type<tc>} {
    %c0 = arith.constant 0 : index
    %c0_0 = arith.constant 0 : index
    %0 = vector.load %arg0[%c0, %c0_0] : memref<8x128xf32, #tpu.memory_space<vmem>>, vector<8x128xf32>
    %c0_1 = arith.constant 0 : index
    %c0_2 = arith.constant 0 : index
    %1 = vector.load %arg1[%c0_1, %c0_2] : memref<128x128xf32, #tpu.memory_space<vmem>>, vector<128x128xf32>
    %cst = arith.constant dense<0.000000e+00> : vector<8x128xf32>
    %2 = tpu.matmul %0, %1, %cst {dimension_numbers = #tpu.dot_dimension_numbers<[1], [0], [0], [1], [0, 0, 1, 1], [], []>} : vector<8x128xf32>, vector<128x128xf32>, vector<8x128xf32> -> vector<8x128xf32>
    %c0_3 = arith.constant 0 : index
    %c0_4 = arith.constant 0 : index
    %3 = vector.load %arg2[%c0_3, %c0_4] : memref<1x128xf32, #tpu.memory_space<vmem>>, vector<1x128xf32>
    %c0_5 = arith.constant 0 : index
    %c0_6 = arith.constant 0 : index
    %4 = vector.load %arg3[%c0_5, %c0_6] : memref<1x128xf32, #tpu.memory_space<vmem>>, vector<1x128xf32>
    %cst_7 = arith.constant dense<0.000000e+00> : vector<128xf32>
    %5 = vector.multi_reduction <add>, %2, %cst_7 [0] : vector<8x128xf32> to vector<128xf32>
    %6 = vector.shape_cast %5 : vector<128xf32> to vector<1x128xf32>
    %cst_8 = arith.constant 8.000000e+00 : f32
    %7 = vector.broadcast %cst_8 : f32 to vector<1x128xf32>
    %8 = arith.divf %6, %7 : vector<1x128xf32>
    %9 = arith.mulf %2, %2 : vector<8x128xf32>
    %cst_9 = arith.constant dense<0.000000e+00> : vector<128xf32>
    %10 = vector.multi_reduction <add>, %9, %cst_9 [0] : vector<8x128xf32> to vector<128xf32>
    %11 = vector.shape_cast %10 : vector<128xf32> to vector<1x128xf32>
    %cst_10 = arith.constant 8.000000e+00 : f32
    %12 = vector.broadcast %cst_10 : f32 to vector<1x128xf32>
    %13 = arith.divf %11, %12 : vector<1x128xf32>
    %14 = arith.mulf %8, %8 : vector<1x128xf32>
    %15 = arith.subf %13, %14 : vector<1x128xf32>
    %cst_11 = arith.constant 0.000000e+00 : f32
    %16 = vector.broadcast %cst_11 : f32 to vector<1x128xf32>
    %17 = arith.maximumf %15, %16 : vector<1x128xf32>
    %cst_12 = arith.constant 9.99999974E-6 : f32
    %18 = vector.broadcast %cst_12 : f32 to vector<1x128xf32>
    %19 = arith.addf %17, %18 : vector<1x128xf32>
    %20 = math.rsqrt %19 : vector<1x128xf32>
    %21 = arith.mulf %3, %20 : vector<1x128xf32>
    %22 = arith.mulf %8, %21 : vector<1x128xf32>
    %23 = arith.subf %4, %22 : vector<1x128xf32>
    %24 = vector.broadcast %21 : vector<1x128xf32> to vector<8x128xf32>
    %25 = arith.mulf %2, %24 : vector<8x128xf32>
    %26 = vector.broadcast %23 : vector<1x128xf32> to vector<8x128xf32>
    %27 = arith.addf %25, %26 : vector<8x128xf32>
    %cst_13 = arith.constant 0.000000e+00 : f32
    %28 = vector.broadcast %cst_13 : f32 to vector<8x128xf32>
    %29 = arith.maximumf %27, %28 : vector<8x128xf32>
    %c0_14 = arith.constant 0 : index
    %c0_15 = arith.constant 0 : index
    %30 = vector.load %arg4[%c0_14, %c0_15] : memref<128x128xf32, #tpu.memory_space<vmem>>, vector<128x128xf32>
    %cst_16 = arith.constant dense<0.000000e+00> : vector<8x128xf32>
    %31 = tpu.matmul %29, %30, %cst_16 {dimension_numbers = #tpu.dot_dimension_numbers<[1], [0], [0], [1], [0, 0, 1, 1], [], []>} : vector<8x128xf32>, vector<128x128xf32>, vector<8x128xf32> -> vector<8x128xf32>
    %c0_17 = arith.constant 0 : index
    %c0_18 = arith.constant 0 : index
    %32 = vector.load %arg5[%c0_17, %c0_18] : memref<1x128xf32, #tpu.memory_space<vmem>>, vector<1x128xf32>
    %c0_19 = arith.constant 0 : index
    %c0_20 = arith.constant 0 : index
    %33 = vector.load %arg6[%c0_19, %c0_20] : memref<1x128xf32, #tpu.memory_space<vmem>>, vector<1x128xf32>
    %cst_21 = arith.constant dense<0.000000e+00> : vector<128xf32>
    %34 = vector.multi_reduction <add>, %31, %cst_21 [0] : vector<8x128xf32> to vector<128xf32>
    %35 = vector.shape_cast %34 : vector<128xf32> to vector<1x128xf32>
    %cst_22 = arith.constant 8.000000e+00 : f32
    %36 = vector.broadcast %cst_22 : f32 to vector<1x128xf32>
    %37 = arith.divf %35, %36 : vector<1x128xf32>
    %38 = arith.mulf %31, %31 : vector<8x128xf32>
    %cst_23 = arith.constant dense<0.000000e+00> : vector<128xf32>
    %39 = vector.multi_reduction <add>, %38, %cst_23 [0] : vector<8x128xf32> to vector<128xf32>
    %40 = vector.shape_cast %39 : vector<128xf32> to vector<1x128xf32>
    %cst_24 = arith.constant 8.000000e+00 : f32
    %41 = vector.broadcast %cst_24 : f32 to vector<1x128xf32>
    %42 = arith.divf %40, %41 : vector<1x128xf32>
    %43 = arith.mulf %37, %37 : vector<1x128xf32>
    %44 = arith.subf %42, %43 : vector<1x128xf32>
    %cst_25 = arith.constant 0.000000e+00 : f32
    %45 = vector.broadcast %cst_25 : f32 to vector<1x128xf32>
    %46 = arith.maximumf %44, %45 : vector<1x128xf32>
    %cst_26 = arith.constant 9.99999974E-6 : f32
    %47 = vector.broadcast %cst_26 : f32 to vector<1x128xf32>
    %48 = arith.addf %46, %47 : vector<1x128xf32>
    %49 = math.rsqrt %48 : vector<1x128xf32>
    %50 = arith.mulf %32, %49 : vector<1x128xf32>
    %51 = arith.mulf %37, %50 : vector<1x128xf32>
    %52 = arith.subf %33, %51 : vector<1x128xf32>
    %53 = vector.broadcast %50 : vector<1x128xf32> to vector<8x128xf32>
    %54 = arith.mulf %31, %53 : vector<8x128xf32>
    %55 = vector.broadcast %52 : vector<1x128xf32> to vector<8x128xf32>
    %56 = arith.addf %54, %55 : vector<8x128xf32>
    %cst_27 = arith.constant 0.000000e+00 : f32
    %57 = vector.broadcast %cst_27 : f32 to vector<8x128xf32>
    %58 = arith.maximumf %56, %57 : vector<8x128xf32>
    %c0_28 = arith.constant 0 : index
    %c0_29 = arith.constant 0 : index
    %59 = vector.load %arg7[%c0_28, %c0_29] : memref<128x128xf32, #tpu.memory_space<vmem>>, vector<128x128xf32>
    %cst_30 = arith.constant dense<0.000000e+00> : vector<8x128xf32>
    %60 = tpu.matmul %58, %59, %cst_30 {dimension_numbers = #tpu.dot_dimension_numbers<[1], [0], [0], [1], [0, 0, 1, 1], [], []>} : vector<8x128xf32>, vector<128x128xf32>, vector<8x128xf32> -> vector<8x128xf32>
    %c0_31 = arith.constant 0 : index
    %c0_32 = arith.constant 0 : index
    %61 = vector.load %arg8[%c0_31, %c0_32] : memref<1x128xf32, #tpu.memory_space<vmem>>, vector<1x128xf32>
    %62 = vector.broadcast %61 : vector<1x128xf32> to vector<8x128xf32>
    %63 = arith.addf %60, %62 : vector<8x128xf32>
    %c0_33 = arith.constant 0 : index
    %c0_34 = arith.constant 0 : index
    %64 = vector.load %arg9[%c0_33, %c0_34] : memref<8x128xf32, #tpu.memory_space<vmem>>, vector<8x128xf32>
    tpu.vector_store %arg9[%c0_33, %c0_34], %63 {strides = array<i32>} : memref<8x128xf32, #tpu.memory_space<vmem>>, vector<8x128xf32>,
    return
  }
}

</mosaic_0001>

<llo_original>
// kernel: tpu_custom_call.1
$region0: #{tpu_custom_call.1}
  #allocation0 [shape = 'u32[]', space=smem, size = 0x4, offset = 0x4, fixed_abs, tag = 'smem constant byte address 0x4 - core index']
  #allocation1 [shape = 'u32[144,128]{1,0:T(1,128)}', space=vmem, size = 0x12000, scoped, tag = 'internal scratch']
  %s0 = inlined_call_operand.hbm [shape: f32[8,128], index: 0, kind: input, shape index: {}]
  %s1 = inlined_call_operand.hbm [shape: f32[128,128], index: 1, kind: input, shape index: {}]
  %s2 = inlined_call_operand.vmem [shape: f32[1,128], index: 2, kind: input, shape index: {}]
  %s3 = inlined_call_operand.vmem [shape: f32[1,128], index: 3, kind: input, shape index: {}]
  %s4 = inlined_call_operand.hbm [shape: f32[128,128], index: 4, kind: input, shape index: {}]
  %s5 = inlined_call_operand.vmem [shape: f32[1,128], index: 5, kind: input, shape index: {}]
  %s6 = inlined_call_operand.vmem [shape: f32[1,128], index: 6, kind: input, shape index: {}]
  %s7 = inlined_call_operand.hbm [shape: f32[128,128], index: 7, kind: input, shape index: {}]
  %s8 = inlined_call_operand.vmem [shape: f32[1,128], index: 8, kind: input, shape index: {}]
  %s9 = inlined_call_operand.hbm [shape: f32[8,128], index: 9, kind: output, shape index: {}]
  %s10 = sld [smem:[#allocation0]]
  $region62: #{tpu_custom_call.1} parent=0
    _
  %s12 = ssub.s32 1, %s10
  %s13 = scalar_select 0, %s12, %s10
  $region1: #{tpu_custom_call.1} parent=0
    #allocation2 [shape = 'u8[4096]{0}', space=vmem, size = 0x1000, scoped, tag = 'input window, operand 0, single buffered']
    #allocation3 [shape = 's32[1]{0}', space=sflag, size = 0x4, scoped, tag = 'scoped memory for tpu_custom_call.1']
    #allocation4 [shape = 's32[1]{0}', space=sflag, size = 0x4, scoped, tag = 'scoped memory for tpu_custom_call.1']
    #allocation5 [shape = 'u8[65536]{0}', space=vmem, size = 0x10000, scoped, tag = 'input window, operand 1, single buffered']
    #allocation6 [shape = 's32[1]{0}', space=sflag, size = 0x4, scoped, tag = 'scoped memory for tpu_custom_call.1']
    #allocation7 [shape = 'u8[65536]{0}', space=vmem, size = 0x10000, scoped, tag = 'input window, operand 4, single buffered']
    #allocation8 [shape = 'u8[65536]{0}', space=vmem, size = 0x10000, scoped, tag = 'input window, operand 7, single buffered']
    #allocation9 [shape = 's32[1]{0}', space=sflag, size = 0x4, scoped, tag = 'scoped memory for tpu_custom_call.1']
    #allocation10 [shape = 'u8[4096]{0}', space=vmem, size = 0x1000, scoped, tag = 'output window, operand 0, single buffered']
    %14 = vsyncpa [#allocation3], 0
    %15 = vsyncpa [#allocation6], 0
    %16 = vsyncpa [#allocation9], 0
    %17 = vsyncpa [#allocation4], 0
    // Predicated region
    $region2: #{tpu_custom_call.1} parent=1 // pred_check
      _
    $region3: #{tpu_custom_call.1} parent=1 // pred_check_branch
      %19 = sbr.rel (0) target = $region5
    $region4: #{tpu_custom_call.1} parent=1 // pred_region
      %s21 = ssub.s32 128, 128
      %22 = vsyncadd [#allocation3], %s21
      %s24 = sshll.u32 [#allocation2], 4
      %s25 = int_to_ptr.vmem [resolvable:$true] %s24
      %27 = dma.hbm_to_vmem [thread:$0]  %s0, 128, %s25, [#allocation3]
    $region5: #{tpu_custom_call.1} parent=1 // pred_fallthru
      _
    // Predicated region
    $region6: #{tpu_custom_call.1} parent=1 // pred_check
      _
    $region7: #{tpu_custom_call.1} parent=1 // pred_check_branch
      %29 = sbr.rel (0) target = $region9
    $region8: #{tpu_custom_call.1} parent=1 // pred_region
      %s31 = ssub.s32 2048, 2048
      %32 = vsyncadd [#allocation6], %s31
      %s33 = sshll.u32 [#allocation5], 4
      %s34 = int_to_ptr.vmem [resolvable:$true] %s33
      %39 = dma.hbm_to_vmem [thread:$0]  %s1, 2048, %s34, [#allocation6], 128, 128, 8
    $region9: #{tpu_custom_call.1} parent=1 // pred_fallthru
      _
    // Predicated region
    $region10: #{tpu_custom_call.1} parent=1 // pred_check
      _
    $region11: #{tpu_custom_call.1} parent=1 // pred_check_branch
      %41 = sbr.rel (0) target = $region13
    $region12: #{tpu_custom_call.1} parent=1 // pred_region
      _
    $region13: #{tpu_custom_call.1} parent=1 // pred_fallthru
      _
    // Predicated region
    $region14: #{tpu_custom_call.1} parent=1 // pred_check
      _
    $region15: #{tpu_custom_call.1} parent=1 // pred_check_branch
      %43 = sbr.rel (0) target = $region17
    $region16: #{tpu_custom_call.1} parent=1 // pred_region
      _
    $region17: #{tpu_custom_call.1} parent=1 // pred_fallthru
      _
    // Predicated region
    $region18: #{tpu_custom_call.1} parent=1 // pred_check
      _
    $region19: #{tpu_custom_call.1} parent=1 // pred_check_branch
      %45 = sbr.rel (0) target = $region21
    $region20: #{tpu_custom_call.1} parent=1 // pred_region
      %s47 = ssub.s32 2048, 2048
      %48 = vsyncadd [#allocation6], %s47
      %s49 = sshll.u32 [#allocation7], 4
      %s50 = int_to_ptr.vmem [resolvable:$true] %s49
      %55 = dma.hbm_to_vmem [thread:$0]  %s4, 2048, %s50, [#allocation6], 128, 128, 8
    $region21: #{tpu_custom_call.1} parent=1 // pred_fallthru
      _
    // Predicated region
    $region22: #{tpu_custom_call.1} parent=1 // pred_check
      _
    $region23: #{tpu_custom_call.1} parent=1 // pred_check_branch
      %57 = sbr.rel (0) target = $region25
    $region24: #{tpu_custom_call.1} parent=1 // pred_region
      _
    $region25: #{tpu_custom_call.1} parent=1 // pred_fallthru
      _
    // Predicated region
    $region26: #{tpu_custom_call.1} parent=1 // pred_check
      _
    $region27: #{tpu_custom_call.1} parent=1 // pred_check_branch
      %59 = sbr.rel (0) target = $region29
    $region28: #{tpu_custom_call.1} parent=1 // pred_region
      _
    $region29: #{tpu_custom_call.1} parent=1 // pred_fallthru
      _
    // Predicated region
    $region30: #{tpu_custom_call.1} parent=1 // pred_check
      _
    $region31: #{tpu_custom_call.1} parent=1 // pred_check_branch
      %61 = sbr.rel (0) target = $region33
    $region32: #{tpu_custom_call.1} parent=1 // pred_region
      %s63 = ssub.s32 2048, 2048
      %64 = vsyncadd [#allocation9], %s63
      %s65 = sshll.u32 [#allocation8], 4
      %s66 = int_to_ptr.vmem [resolvable:$true] %s65
      %71 = dma.hbm_to_vmem [thread:$0]  %s7, 2048, %s66, [#allocation9], 128, 128, 8
    $region33: #{tpu_custom_call.1} parent=1 // pred_fallthru
      _
    // Predicated region
    $region34: #{tpu_custom_call.1} parent=1 // pred_check
      _
    $region35: #{tpu_custom_call.1} parent=1 // pred_check_branch
      %73 = sbr.rel (0) target = $region37
    $region36: #{tpu_custom_call.1} parent=1 // pred_region
      _
    $region37: #{tpu_custom_call.1} parent=1 // pred_fallthru
      _
    // Predicated region
    $region38: #{tpu_custom_call.1} parent=1 // pred_check
      _
    $region39: #{tpu_custom_call.1} parent=1 // pred_check_branch
      %75 = sbr.rel (0) target = $region41
    $region40: #{tpu_custom_call.1} parent=1 // pred_region
      %76 = dma.done [#allocation3], 128
    $region41: #{tpu_custom_call.1} parent=1 // pred_fallthru
      _
    // Predicated region
    $region42: #{tpu_custom_call.1} parent=1 // pred_check
      _
    $region43: #{tpu_custom_call.1} parent=1 // pred_check_branch
      %78 = sbr.rel (0) target = $region45
    $region44: #{tpu_custom_call.1} parent=1 // pred_region
      %79 = dma.done [#allocation6], 2048
    $region45: #{tpu_custom_call.1} parent=1 // pred_fallthru
      _
    // Predicated region
    $region46: #{tpu_custom_call.1} parent=1 // pred_check
      _
    $region47: #{tpu_custom_call.1} parent=1 // pred_check_branch
      %81 = sbr.rel (0) target = $region49
    $region48: #{tpu_custom_call.1} parent=1 // pred_region
      %82 = dma.done [#allocation6], 2048
    $region49: #{tpu_custom_call.1} parent=1 // pred_fallthru
      _
    // Predicated region
    $region50: #{tpu_custom_call.1} parent=1 // pred_check
      _
    $region51: #{tpu_custom_call.1} parent=1 // pred_check_branch
      %84 = sbr.rel (0) target = $region53
    $region52: #{tpu_custom_call.1} parent=1 // pred_region
      %85 = dma.done [#allocation9], 2048
    $region53: #{tpu_custom_call.1} parent=1 // pred_fallthru
      _
    %v86 = vld [vmem:[#allocation2] sm:$0xff]
    %v87 = vld [vmem:[#allocation5] sm:$0xff]
    %v88 = vld [vmem:[#allocation5 + $0x8] sm:$0xff]
    %v89 = vld [vmem:[#allocation5 + $0x10] sm:$0xff]
    %v90 = vld [vmem:[#allocation5 + $0x18] sm:$0xff]
    %v91 = vld [vmem:[#allocation5 + $0x20] sm:$0xff]
    %v92 = vld [vmem:[#allocation5 + $0x28] sm:$0xff]
    %v93 = vld [vmem:[#allocation5 + $0x30] sm:$0xff]
    %v94 = vld [vmem:[#allocation5 + $0x38] sm:$0xff]
    %v95 = vld [vmem:[#allocation5 + $0x40] sm:$0xff]
    %v96 = vld [vmem:[#allocation5 + $0x48] sm:$0xff]
    %v97 = vld [vmem:[#allocation5 + $0x50] sm:$0xff]
    %v98 = vld [vmem:[#allocation5 + $0x58] sm:$0xff]
    %v99 = vld [vmem:[#allocation5 + $0x60] sm:$0xff]
    %v100 = vld [vmem:[#allocation5 + $0x68] sm:$0xff]
    %v101 = vld [vmem:[#allocation5 + $0x70] sm:$0xff]
    %v102 = vld [vmem:[#allocation5 + $0x78] sm:$0xff]
    %103 = vmatprep.subr.mxu0 0.0
    %104 = vmatpush1.msra.mxu0 %v87
    %105 = vmatprep.subr.mxu0 0.0
    %106 = vmatpush1.msra.mxu0 %v88
    %107 = vmatprep.subr.mxu0 0.0
    %108 = vmatpush1.msra.mxu0 %v89
    %109 = vmatprep.subr.mxu0 0.0
    %110 = vmatpush1.msra.mxu0 %v90
    %111 = vmatprep.subr.mxu0 0.0
    %112 = vmatpush1.msra.mxu0 %v91
    %113 = vmatprep.subr.mxu0 0.0
    %114 = vmatpush1.msra.mxu0 %v92
    %115 = vmatprep.subr.mxu0 0.0
    %116 = vmatpush1.msra.mxu0 %v93
    %117 = vmatprep.subr.mxu0 0.0
    %118 = vmatpush1.msra.mxu0 %v94
    %119 = vmatprep.subr.mxu0 0.0
    %120 = vmatpush1.msra.mxu0 %v95
    %121 = vmatprep.subr.mxu0 0.0
    %122 = vmatpush1.msra.mxu0 %v96
    %123 = vmatprep.subr.mxu0 0.0
    %124 = vmatpush1.msra.mxu0 %v97
    %125 = vmatprep.subr.mxu0 0.0
    %126 = vmatpush1.msra.mxu0 %v98
    %127 = vmatprep.subr.mxu0 0.0
    %128 = vmatpush1.msra.mxu0 %v99
    %129 = vmatprep.subr.mxu0 0.0
    %130 = vmatpush1.msra.mxu0 %v100
    %131 = vmatprep.subr.mxu0 0.0
    %132 = vmatpush1.msra.mxu0 %v101
    %133 = vmatprep.subr.mxu0 0.0
    %134 = vmatpush1.msra.mxu0 %v102
    %135 = vmatprep.subr.mxu0 0.0
    %136 = vmatpush1.msra.mxu0 0.0
    %137 = vmatprep.subr.mxu0 0.0
    %138 = vmatpush1.msra.mxu0 0.0
    %139 = vmatprep.subr.mxu0 0.0
    %140 = vmatpush1.msra.mxu0 0.0
    %141 = vmatprep.subr.mxu0 0.0
    %142 = vmatpush1.msra.mxu0 0.0
    %143 = vmatprep.subr.mxu0 0.0
    %144 = vmatpush1.msra.mxu0 0.0
    %145 = vmatprep.subr.mxu0 0.0
    %146 = vmatpush1.msra.mxu0 0.0
    %147 = vmatprep.subr.mxu0 0.0
    %148 = vmatpush1.msra.mxu0 0.0
    %149 = vmatprep.subr.mxu0 0.0
    %150 = vmatpush1.msra.mxu0 0.0
    %151 = vmatprep.subr.mxu0 0.0
    %152 = vmatpush1.msra.mxu0 0.0
    %153 = vmatprep.subr.mxu0 0.0
    %154 = vmatpush1.msra.mxu0 0.0
    %155 = vmatprep.subr.mxu0 0.0
    %156 = vmatpush1.msra.mxu0 0.0
    %157 = vmatprep.subr.mxu0 0.0
    %158 = vmatpush1.msra.mxu0 0.0
    %159 = vmatprep.subr.mxu0 0.0
    %160 = vmatpush1.msra.mxu0 0.0
    %161 = vmatprep.subr.mxu0 0.0
    %162 = vmatpush1.msra.mxu0 0.0
    %163 = vmatprep.subr.mxu0 0.0
    %164 = vmatpush1.msra.mxu0 0.0
    %165 = vmatprep.subr.mxu0 0.0
    %166 = vmatpush1.msra.mxu0 0.0
    %167 = vmatprep.mubr.f32.mxu0 0.0
    %168 = vmatmul.mubr.f32.gmra.mrb[0].mxu0 %v86
    %v169 = vpop.f32.mrb[0].mxu0
    %v170 = vadd.f32 0.0, %v169
    %v171 = vpop.f32.mrb[0].mxu0
    %172 = vdwg.mxu0
    %v173 = vld [vmem:[%s2] sm:$0x1]
    %v174 = vld [vmem:[%s3] sm:$0x1]
    %v175 = vrot.slane %v170, 4
    %v176 = vadd.f32 %v170, %v175
    %v177 = vrot.slane %v176, 2
    %v178 = vadd.f32 %v176, %v177
    %v179 = vrot.slane %v178, 1
    %v180 = vadd.f32 %v178, %v179
    %v181 = vrcp.pop 8.0
    %v182 = vmul.f32 %v180, %v181
    %v183 = vmul.f32 %v170, %v170
    %v184 = vrot.slane %v183, 4
    %v185 = vadd.f32 %v183, %v184
    %v186 = vrot.slane %v185, 2
    %v187 = vadd.f32 %v185, %v186
    %v188 = vrot.slane %v187, 1
    %v189 = vadd.f32 %v187, %v188
    %v190 = vmul.f32 %v189, %v181
    %v191 = vmul.f32 %v182, %v182
    %v192 = vsub.f32 %v190, %v191
    %v193 = vmax.f32 %v192, 0.0
    %v194 = vadd.f32 %v193, 1e-05
    %v195 = vrsqrt.pop %v194
    %v196 = vmul.f32 %v173, %v195
    %v197 = vmul.f32 %v182, %v196
    %v198 = vsub.f32 %v174, %v197
    %v200 = vlaneseq
    %v201 = vshrl.u32 %v200, 7
    %v202 = vsub.s32 0, %v201
    %v203 = vrot.slane %v196, %v202
    %v205 = vmul.f32 %v170, %v203
    %v207 = vlaneseq
    %v208 = vshrl.u32 %v207, 7
    %v209 = vsub.s32 0, %v208
    %v210 = vrot.slane %v198, %v209
    %v212 = vadd.f32 %v205, %v210
    %v213 = vmax.f32 %v212, 0.0
    %v214 = vld [vmem:[#allocation7] sm:$0xff]
    %v215 = vld [vmem:[#allocation7 + $0x8] sm:$0xff]
    %v216 = vld [vmem:[#allocation7 + $0x10] sm:$0xff]
    %v217 = vld [vmem:[#allocation7 + $0x18] sm:$0xff]
    %v218 = vld [vmem:[#allocation7 + $0x20] sm:$0xff]
    %v219 = vld [vmem:[#allocation7 + $0x28] sm:$0xff]
    %v220 = vld [vmem:[#allocation7 + $0x30] sm:$0xff]
    %v221 = vld [vmem:[#allocation7 + $0x38] sm:$0xff]
    %v222 = vld [vmem:[#allocation7 + $0x40] sm:$0xff]
    %v223 = vld [vmem:[#allocation7 + $0x48] sm:$0xff]
    %v224 = vld [vmem:[#allocation7 + $0x50] sm:$0xff]
    %v225 = vld [vmem:[#allocation7 + $0x58] sm:$0xff]
    %v226 = vld [vmem:[#allocation7 + $0x60] sm:$0xff]
    %v227 = vld [vmem:[#allocation7 + $0x68] sm:$0xff]
    %v228 = vld [vmem:[#allocation7 + $0x70] sm:$0xff]
    %v229 = vld [vmem:[#allocation7 + $0x78] sm:$0xff]
    %230 = vmatprep.subr.mxu0 0.0
    %231 = vmatpush1.msra.mxu0 %v214
    %232 = vmatprep.subr.mxu0 0.0
    %233 = vmatpush1.msra.mxu0 %v215
    %234 = vmatprep.subr.mxu0 0.0
    %235 = vmatpush1.msra.mxu0 %v216
    %236 = vmatprep.subr.mxu0 0.0
    %237 = vmatpush1.msra.mxu0 %v217
    %238 = vmatprep.subr.mxu0 0.0
    %239 = vmatpush1.msra.mxu0 %v218
    %240 = vmatprep.subr.mxu0 0.0
    %241 = vmatpush1.msra.mxu0 %v219
    %242 = vmatprep.subr.mxu0 0.0
    %243 = vmatpush1.msra.mxu0 %v220
    %244 = vmatprep.subr.mxu0 0.0
    %245 = vmatpush1.msra.mxu0 %v221
    %246 = vmatprep.subr.mxu0 0.0
    %247 = vmatpush1.msra.mxu0 %v222
    %248 = vmatprep.subr.mxu0 0.0
    %249 = vmatpush1.msra.mxu0 %v223
    %250 = vmatprep.subr.mxu0 0.0
    %251 = vmatpush1.msra.mxu0 %v224
    %252 = vmatprep.subr.mxu0 0.0
    %253 = vmatpush1.msra.mxu0 %v225
    %254 = vmatprep.subr.mxu0 0.0
    %255 = vmatpush1.msra.mxu0 %v226
    %256 = vmatprep.subr.mxu0 0.0
    %257 = vmatpush1.msra.mxu0 %v227
    %258 = vmatprep.subr.mxu0 0.0
    %259 = vmatpush1.msra.mxu0 %v228
    %260 = vmatprep.subr.mxu0 0.0
    %261 = vmatpush1.msra.mxu0 %v229
    %262 = vmatprep.subr.mxu0 0.0
    %263 = vmatpush1.msra.mxu0 0.0
    %264 = vmatprep.subr.mxu0 0.0
    %265 = vmatpush1.msra.mxu0 0.0
    %266 = vmatprep.subr.mxu0 0.0
    %267 = vmatpush1.msra.mxu0 0.0
    %268 = vmatprep.subr.mxu0 0.0
    %269 = vmatpush1.msra.mxu0 0.0
    %270 = vmatprep.subr.mxu0 0.0
    %271 = vmatpush1.msra.mxu0 0.0
    %272 = vmatprep.subr.mxu0 0.0
    %273 = vmatpush1.msra.mxu0 0.0
    %274 = vmatprep.subr.mxu0 0.0
    %275 = vmatpush1.msra.mxu0 0.0
    %276 = vmatprep.subr.mxu0 0.0
    %277 = vmatpush1.msra.mxu0 0.0
    %278 = vmatprep.subr.mxu0 0.0
    %279 = vmatpush1.msra.mxu0 0.0
    %280 = vmatprep.subr.mxu0 0.0
    %281 = vmatpush1.msra.mxu0 0.0
    %282 = vmatprep.subr.mxu0 0.0
    %283 = vmatpush1.msra.mxu0 0.0
    %284 = vmatprep.subr.mxu0 0.0
    %285 = vmatpush1.msra.mxu0 0.0
    %286 = vmatprep.subr.mxu0 0.0
    %287 = vmatpush1.msra.mxu0 0.0
    %288 = vmatprep.subr.mxu0 0.0
    %289 = vmatpush1.msra.mxu0 0.0
    %290 = vmatprep.subr.mxu0 0.0
    %291 = vmatpush1.msra.mxu0 0.0
    %292 = vmatprep.subr.mxu0 0.0
    %293 = vmatpush1.msra.mxu0 0.0
    %294 = vmatprep.mubr.f32.mxu0 0.0
    %295 = vmatmul.mubr.f32.gmra.mrb[0].mxu0 %v213
    %v296 = vpop.f32.mrb[0].mxu0
    %v297 = vadd.f32 0.0, %v296
    %v298 = vpop.f32.mrb[0].mxu0
    %299 = vdwg.mxu0
    %v300 = vld [vmem:[%s5] sm:$0x1]
    %v301 = vld [vmem:[%s6] sm:$0x1]
    %v302 = vrot.slane %v297, 4
    %v303 = vadd.f32 %v297, %v302
    %v304 = vrot.slane %v303, 2
    %v305 = vadd.f32 %v303, %v304
    %v306 = vrot.slane %v305, 1
    %v307 = vadd.f32 %v305, %v306
    %v308 = vmul.f32 %v307, %v181
    %v309 = vmul.f32 %v297, %v297
    %v310 = vrot.slane %v309, 4
    %v311 = vadd.f32 %v309, %v310
    %v312 = vrot.slane %v311, 2
    %v313 = vadd.f32 %v311, %v312
    %v314 = vrot.slane %v313, 1
    %v315 = vadd.f32 %v313, %v314
    %v316 = vmul.f32 %v315, %v181
    %v317 = vmul.f32 %v308, %v308
    %v318 = vsub.f32 %v316, %v317
    %v319 = vmax.f32 %v318, 0.0
    %v320 = vadd.f32 %v319, 1e-05
    %v321 = vrsqrt.pop %v320
    %v322 = vmul.f32 %v300, %v321
    %v323 = vmul.f32 %v308, %v322
    %v324 = vsub.f32 %v301, %v323
    %v326 = vlaneseq
    %v327 = vshrl.u32 %v326, 7
    %v328 = vsub.s32 0, %v327
    %v329 = vrot.slane %v322, %v328
    %v331 = vmul.f32 %v297, %v329
    %v333 = vlaneseq
    %v334 = vshrl.u32 %v333, 7
    %v335 = vsub.s32 0, %v334
    %v336 = vrot.slane %v324, %v335
    %v338 = vadd.f32 %v331, %v336
    %v339 = vmax.f32 %v338, 0.0
    %v340 = vld [vmem:[#allocation8] sm:$0xff]
    %v341 = vld [vmem:[#allocation8 + $0x8] sm:$0xff]
    %v342 = vld [vmem:[#allocation8 + $0x10] sm:$0xff]
    %v343 = vld [vmem:[#allocation8 + $0x18] sm:$0xff]
    %v344 = vld [vmem:[#allocation8 + $0x20] sm:$0xff]
    %v345 = vld [vmem:[#allocation8 + $0x28] sm:$0xff]
    %v346 = vld [vmem:[#allocation8 + $0x30] sm:$0xff]
    %v347 = vld [vmem:[#allocation8 + $0x38] sm:$0xff]
    %v348 = vld [vmem:[#allocation8 + $0x40] sm:$0xff]
    %v349 = vld [vmem:[#allocation8 + $0x48] sm:$0xff]
    %v350 = vld [vmem:[#allocation8 + $0x50] sm:$0xff]
    %v351 = vld [vmem:[#allocation8 + $0x58] sm:$0xff]
    %v352 = vld [vmem:[#allocation8 + $0x60] sm:$0xff]
    %v353 = vld [vmem:[#allocation8 + $0x68] sm:$0xff]
    %v354 = vld [vmem:[#allocation8 + $0x70] sm:$0xff]
    %v355 = vld [vmem:[#allocation8 + $0x78] sm:$0xff]
    %v356 = vld [vmem:[%s8] sm:$0x1]
    %v358 = vlaneseq
    %v359 = vshrl.u32 %v358, 7
    %v360 = vsub.s32 0, %v359
    %v361 = vrot.slane %v356, %v360
    %363 = vmatprep.subr.mxu0 0.0
    %364 = vmatpush1.msra.mxu0 %v340
    %365 = vmatprep.subr.mxu0 0.0
    %366 = vmatpush1.msra.mxu0 %v341
    %367 = vmatprep.subr.mxu0 0.0
    %368 = vmatpush1.msra.mxu0 %v342
    %369 = vmatprep.subr.mxu0 0.0
    %370 = vmatpush1.msra.mxu0 %v343
    %371 = vmatprep.subr.mxu0 0.0
    %372 = vmatpush1.msra.mxu0 %v344
    %373 = vmatprep.subr.mxu0 0.0
    %374 = vmatpush1.msra.mxu0 %v345
    %375 = vmatprep.subr.mxu0 0.0
    %376 = vmatpush1.msra.mxu0 %v346
    %377 = vmatprep.subr.mxu0 0.0
    %378 = vmatpush1.msra.mxu0 %v347
    %379 = vmatprep.subr.mxu0 0.0
    %380 = vmatpush1.msra.mxu0 %v348
    %381 = vmatprep.subr.mxu0 0.0
    %382 = vmatpush1.msra.mxu0 %v349
    %383 = vmatprep.subr.mxu0 0.0
    %384 = vmatpush1.msra.mxu0 %v350
    %385 = vmatprep.subr.mxu0 0.0
    %386 = vmatpush1.msra.mxu0 %v351
    %387 = vmatprep.subr.mxu0 0.0
    %388 = vmatpush1.msra.mxu0 %v352
    %389 = vmatprep.subr.mxu0 0.0
    %390 = vmatpush1.msra.mxu0 %v353
    %391 = vmatprep.subr.mxu0 0.0
    %392 = vmatpush1.msra.mxu0 %v354
    %393 = vmatprep.subr.mxu0 0.0
    %394 = vmatpush1.msra.mxu0 %v355
    %395 = vmatprep.subr.mxu0 0.0
    %396 = vmatpush1.msra.mxu0 0.0
    %397 = vmatprep.subr.mxu0 0.0
    %398 = vmatpush1.msra.mxu0 0.0
    %399 = vmatprep.subr.mxu0 0.0
    %400 = vmatpush1.msra.mxu0 0.0
    %401 = vmatprep.subr.mxu0 0.0
    %402 = vmatpush1.msra.mxu0 0.0
    %403 = vmatprep.subr.mxu0 0.0
    %404 = vmatpush1.msra.mxu0 0.0
    %405 = vmatprep.subr.mxu0 0.0
    %406 = vmatpush1.msra.mxu0 0.0
    %407 = vmatprep.subr.mxu0 0.0
    %408 = vmatpush1.msra.mxu0 0.0
    %409 = vmatprep.subr.mxu0 0.0
    %410 = vmatpush1.msra.mxu0 0.0
    %411 = vmatprep.subr.mxu0 0.0
    %412 = vmatpush1.msra.mxu0 0.0
    %413 = vmatprep.subr.mxu0 0.0
    %414 = vmatpush1.msra.mxu0 0.0
    %415 = vmatprep.subr.mxu0 0.0
    %416 = vmatpush1.msra.mxu0 0.0
    %417 = vmatprep.subr.mxu0 0.0
    %418 = vmatpush1.msra.mxu0 0.0
    %419 = vmatprep.subr.mxu0 0.0
    %420 = vmatpush1.msra.mxu0 0.0
    %421 = vmatprep.subr.mxu0 0.0
    %422 = vmatpush1.msra.mxu0 0.0
    %423 = vmatprep.subr.mxu0 0.0
    %424 = vmatpush1.msra.mxu0 0.0
    %425 = vmatprep.subr.mxu0 0.0
    %426 = vmatpush1.msra.mxu0 0.0
    %427 = vmatprep.mubr.f32.mxu0 0.0
    %428 = vmatmul.mubr.f32.gmra.mrb[0].mxu0 %v339
    %v429 = vpop.f32.mrb[0].mxu0
    %v430 = vadd.f32 %v361, %v429
    %v431 = vpop.f32.mrb[0].mxu0
    %432 = vdwg.mxu0
    %433 = vst [vmem:[#allocation10] sm:$0xff] %v430
    // Predicated region
    $region54: #{tpu_custom_call.1} parent=1 // pred_check
      _
    $region55: #{tpu_custom_call.1} parent=1 // pred_check_branch
      %435 = sbr.rel (0) target = $region57
    $region56: #{tpu_custom_call.1} parent=1 // pred_region
      %s437 = ssub.s32 128, 128
      %438 = vsyncadd [#allocation4], %s437
      %s440 = sshll.u32 [#allocation10], 4
      %s441 = int_to_ptr.vmem [resolvable:$true] %s440
      %443 = dma.vmem_to_hbm [thread:$0]  %s441, 128, %s9, [#allocation4]
    $region57: #{tpu_custom_call.1} parent=1 // pred_fallthru
      _
    // Predicated region
    $region58: #{tpu_custom_call.1} parent=1 // pred_check
      _
    $region59: #{tpu_custom_call.1} parent=1 // pred_check_branch
      %445 = sbr.rel (0) target = $region61
    $region60: #{tpu_custom_call.1} parent=1 // pred_region
      %446 = dma.done [#allocation4], 128
    $region61: #{tpu_custom_call.1} parent=1 // pred_fallthru
      _
    %447 = vsyncpa [#allocation3], 1
    %448 = vsyncpa [#allocation6], 1
    %449 = vsyncpa [#allocation9], 1
    %450 = vsyncpa [#allocation4], 1

</llo_original>
